<compile_context>
chip_gen: v7x
topology: tpu7x:2x2x1
jax: 0.10.0
libtpu: 0.0.40
codegen_flags: <defaults>
</compile_context>

<pallas_src>
import functools

import jax
import jax.numpy as jnp
from jax import lax
from jax.experimental import pallas as pl
from jax.experimental.pallas import tpu as pltpu


def _dsc_kernel(x_ref, mask_ref, weff_ref, beff_ref, out_ref, *, W):
    # x_ref    : (1, Cin, H*W)   raw flattened image (lane axis = h*W + w, no halo)
    # mask_ref : (2, H*W)        row 0: kill w == 0 (dx = -1 taps), row 1: kill w == W-1
    # weff_ref : (Cout, 9*Cin)   folded depthwise*pointwise weight, tap-major
    # beff_ref : (Cout, 1)       folded bias
    # out_ref  : (1, Cout, H*W)  NCHW output, flattened lane-dense spatial axis
    Cin = x_ref.shape[1]
    HW = x_ref.shape[2]

    x = x_ref[0]                                             # (Cin, HW)

    # In-kernel zero halo (vreg/VMEM temp). Replaces the old wrapper-side HBM pad
    # and the +50% larger per-step input DMA.
    z = jnp.zeros((Cin, W + 1), x.dtype)
    xp = jnp.concatenate([z, x, z], axis=1)                  # (Cin, HW + 2W + 2)

    mask_l = mask_ref[0:1, :]                                # (1, HW), precomputed
    mask_r = mask_ref[1:2, :]

    # im2col: 9 static lane slices of the halo'd image, stacked tap-major on sublanes.
    taps = []
    for dy in range(3):
        for dxi in range(3):
            off = dy * W + dxi                               # static lane offset
            t = xp[:, off:off + HW]                          # (Cin, HW)
            if dxi == 0:
                t = t * mask_l                               # dx = -1: drop w == 0
            elif dxi == 2:
                t = t * mask_r                               # dx = +1: drop w == W-1
            taps.append(t)
    col = jnp.concatenate(taps, axis=0)                      # (9*Cin, HW)

    # Depthwise + pointwise as a single MXU contraction over (tap, Cin).
    y = jnp.dot(weff_ref[...], col, preferred_element_type=jnp.float32)
    y = y + beff_ref[...]                                    # (Cout, HW), lane-dense
    out_ref[0] = y.astype(out_ref.dtype)


def depthwise_separable_conv(x, dw_w, dw_b, pw_w, pw_b):
    """x: (B, Cin, H, W) NCHW.  dw_w: (Cin, 1, 3, 3), dw_b: (Cin,),
       pw_w: (Cout, Cin, 1, 1), pw_b: (Cout,).  Returns (B, Cout, H, W)."""
    B, Cin, H, W = x.shape
    Cout = pw_w.shape[0]
    HW = H * W

    # Free contiguous reshape only -- no pad, no transpose, no extra HBM pass.
    xf = x.reshape(B, Cin, HW)

    # Fold depthwise into pointwise (tiny, done once in XLA, exact elementwise math).
    dw = dw_w.reshape(Cin, 9)                                # tap t = ky*3 + kx
    pw = pw_w.reshape(Cout, Cin)
    weff = (pw[:, None, :] * dw.T[None, :, :]).reshape(Cout, 9 * Cin)
    beff = ((pw * dw_b[None, :]).sum(axis=1) + pw_b).reshape(Cout, 1)

    # Column-boundary masks, hoisted out of the kernel (works for any W, not just 2^k).
    wpos = jnp.arange(HW, dtype=jnp.int32) % W
    masks = jnp.stack([(wpos > 0), (wpos < W - 1)], axis=0).astype(x.dtype)  # (2, HW)

    out = pl.pallas_call(
        functools.partial(_dsc_kernel, W=W),
        out_shape=jax.ShapeDtypeStruct((B, Cout, HW), jnp.float32),
        grid_spec=pltpu.PrefetchScalarGridSpec(
            num_scalar_prefetch=0,
            grid=(B,),
            in_specs=[
                pl.BlockSpec((1, Cin, HW), lambda b: (b, 0, 0)),
                pl.BlockSpec((2, HW), lambda b: (0, 0)),
                pl.BlockSpec((Cout, 9 * Cin), lambda b: (0, 0)),
                pl.BlockSpec((Cout, 1), lambda b: (0, 0)),
            ],
            out_specs=pl.BlockSpec((1, Cout, HW), lambda b: (b, 0, 0)),
        ),
        compiler_params=pltpu.CompilerParams(
            dimension_semantics=("parallel",)),
    )(xf, masks, weff, beff)

    return out.reshape(B, Cout, H, W)                        # contiguous -> free reshape


def reference(x, dw_w, dw_b, pw_w, pw_b):
    """Pure-JAX reference matching the PyTorch module forward."""
    Cin = x.shape[1]
    y = lax.conv_general_dilated(
        x, dw_w, window_strides=(1, 1), padding=((1, 1), (1, 1)),
        dimension_numbers=('NCHW', 'OIHW', 'NCHW'),
        feature_group_count=Cin, precision=lax.Precision.HIGHEST)
    y = y + dw_b[None, :, None, None]
    z = lax.conv_general_dilated(
        y, pw_w, window_strides=(1, 1), padding='VALID',
        dimension_numbers=('NCHW', 'OIHW', 'NCHW'),
        precision=lax.Precision.HIGHEST)
    return z + pw_b[None, :, None, None]


if __name__ == "__main__":
    # DepthwiseSeparableConv(in_channels=16, out_channels=32, kernel_size=3, stride=1, padding=1)
    B, Cin, Cout, H, W = 2, 16, 32, 16, 16

    key = jax.random.PRNGKey(0)
    ks = jax.random.split(key, 5)
    x = jax.random.normal(ks[0], (B, Cin, H, W), jnp.float32)
    dw_w = jax.random.normal(ks[1], (Cin, 1, 3, 3), jnp.float32) * 0.2    # depthwise weight (OIHW, groups=Cin)
    dw_b = jax.random.normal(ks[2], (Cin,), jnp.float32) * 0.1            # depthwise bias
    pw_w = jax.random.normal(ks[3], (Cout, Cin, 1, 1), jnp.float32) * 0.2  # pointwise 1x1 weight
    pw_b = jax.random.normal(ks[4], (Cout,), jnp.float32) * 0.1           # pointwise bias

    out = jax.block_until_ready(depthwise_separable_conv(x, dw_w, dw_b, pw_w, pw_b))
    ref = reference(x, dw_w, dw_b, pw_w, pw_b)

    assert out.shape == (B, Cout, H, W), out.shape
    assert jnp.allclose(out, ref, atol=2e-4, rtol=2e-4), float(jnp.max(jnp.abs(out - ref)))
    print("KERNEL_OK")
</pallas_src>

<mosaic_0001>
module attributes {stable_mosaic.version = 11 : i64} {
  func.func @_dsc_kernel(%arg0: i32, %arg1: memref<1x16x256xf32, #tpu.memory_space<vmem>>, %arg2: memref<2x256xf32, #tpu.memory_space<vmem>>, %arg3: memref<32x144xf32, #tpu.memory_space<vmem>>, %arg4: memref<32x1xf32, #tpu.memory_space<vmem>>, %arg5: memref<1x32x256xf32, #tpu.memory_space<vmem>>) attributes {dimension_semantics = [#tpu.dimension_semantics<parallel>], iteration_bounds = array<i64: 2>, scalar_prefetch = 0 : i64, scratch_operands = 0 : i64, tpu.core_type = #tpu.core_type<tc>, window_params = [{transform_indices = @transform_0, window_bounds = array<i64: 1, 16, 256>}, {pipeline_mode = #tpu.pipeline_mode<synchronous>, transform_indices = @transform_1, window_bounds = array<i64: 2, 256>}, {pipeline_mode = #tpu.pipeline_mode<synchronous>, transform_indices = @transform_2, window_bounds = array<i64: 32, 144>}, {pipeline_mode = #tpu.pipeline_mode<synchronous>, transform_indices = @transform_3, window_bounds = array<i64: 32, 1>}, {transform_indices = @transform_4, window_bounds = array<i64: 1, 32, 256>}]} {
    %c0 = arith.constant 0 : index
    %c0_0 = arith.constant 0 : index
    %c0_1 = arith.constant 0 : index
    %0 = vector.load %arg1[%c0, %c0_0, %c0_1] : memref<1x16x256xf32, #tpu.memory_space<vmem>>, vector<1x16x256xf32>
    %1 = vector.shape_cast %0 : vector<1x16x256xf32> to vector<16x256xf32>
    %cst = arith.constant 0.000000e+00 : f32
    %2 = vector.broadcast %cst : f32 to vector<16x17xf32>
    %3 = tpu.concatenate %2, %1, %2 in 1 : vector<16x17xf32>, vector<16x256xf32>, vector<16x17xf32> -> vector<16x290xf32>
    %c0_2 = arith.constant 0 : index
    %c0_3 = arith.constant 0 : index
    %4 = vector.load %arg2[%c0_2, %c0_3] : memref<2x256xf32, #tpu.memory_space<vmem>>, vector<1x256xf32>
    %c1 = arith.constant 1 : index
    %c0_4 = arith.constant 0 : index
    %5 = vector.load %arg2[%c1, %c0_4] : memref<2x256xf32, #tpu.memory_space<vmem>>, vector<1x256xf32>
    %6 = vector.extract_strided_slice %3 {offsets = [0, 0], sizes = [16, 256], strides = [1, 1]} : vector<16x290xf32> to vector<16x256xf32>
    %7 = vector.broadcast %4 : vector<1x256xf32> to vector<16x256xf32>
    %8 = arith.mulf %6, %7 : vector<16x256xf32>
    %9 = vector.extract_strided_slice %3 {offsets = [0, 1], sizes = [16, 256], strides = [1, 1]} : vector<16x290xf32> to vector<16x256xf32>
    %10 = vector.extract_strided_slice %3 {offsets = [0, 2], sizes = [16, 256], strides = [1, 1]} : vector<16x290xf32> to vector<16x256xf32>
    %11 = vector.broadcast %5 : vector<1x256xf32> to vector<16x256xf32>
    %12 = arith.mulf %10, %11 : vector<16x256xf32>
    %13 = vector.extract_strided_slice %3 {offsets = [0, 16], sizes = [16, 256], strides = [1, 1]} : vector<16x290xf32> to vector<16x256xf32>
    %14 = vector.broadcast %4 : vector<1x256xf32> to vector<16x256xf32>
    %15 = arith.mulf %13, %14 : vector<16x256xf32>
    %16 = vector.extract_strided_slice %3 {offsets = [0, 17], sizes = [16, 256], strides = [1, 1]} : vector<16x290xf32> to vector<16x256xf32>
    %17 = vector.extract_strided_slice %3 {offsets = [0, 18], sizes = [16, 256], strides = [1, 1]} : vector<16x290xf32> to vector<16x256xf32>
    %18 = vector.broadcast %5 : vector<1x256xf32> to vector<16x256xf32>
    %19 = arith.mulf %17, %18 : vector<16x256xf32>
    %20 = vector.extract_strided_slice %3 {offsets = [0, 32], sizes = [16, 256], strides = [1, 1]} : vector<16x290xf32> to vector<16x256xf32>
    %21 = vector.broadcast %4 : vector<1x256xf32> to vector<16x256xf32>
    %22 = arith.mulf %20, %21 : vector<16x256xf32>
    %23 = vector.extract_strided_slice %3 {offsets = [0, 33], sizes = [16, 256], strides = [1, 1]} : vector<16x290xf32> to vector<16x256xf32>
    %24 = vector.extract_strided_slice %3 {offsets = [0, 34], sizes = [16, 256], strides = [1, 1]} : vector<16x290xf32> to vector<16x256xf32>
    %25 = vector.broadcast %5 : vector<1x256xf32> to vector<16x256xf32>
    %26 = arith.mulf %24, %25 : vector<16x256xf32>
    %27 = tpu.concatenate %8, %9, %12, %15, %16, %19, %22, %23, %26 in 0 : vector<16x256xf32>, vector<16x256xf32>, vector<16x256xf32>, vector<16x256xf32>, vector<16x256xf32>, vector<16x256xf32>, vector<16x256xf32>, vector<16x256xf32>, vector<16x256xf32> -> vector<144x256xf32>
    %c0_5 = arith.constant 0 : index
    %c0_6 = arith.constant 0 : index
    %28 = vector.load %arg3[%c0_5, %c0_6] : memref<32x144xf32, #tpu.memory_space<vmem>>, vector<32x144xf32>
    %cst_7 = arith.constant dense<0.000000e+00> : vector<32x256xf32>
    %29 = tpu.matmul %28, %27, %cst_7 {dimension_numbers = #tpu.dot_dimension_numbers<[1], [0], [0], [1], [0, 0, 1, 1], [], []>} : vector<32x144xf32>, vector<144x256xf32>, vector<32x256xf32> -> vector<32x256xf32>
    %c0_8 = arith.constant 0 : index
    %c0_9 = arith.constant 0 : index
    %30 = vector.load %arg4[%c0_8, %c0_9] : memref<32x1xf32, #tpu.memory_space<vmem>>, vector<32x1xf32>
    %31 = vector.broadcast %30 : vector<32x1xf32> to vector<32x256xf32>
    %32 = arith.addf %29, %31 : vector<32x256xf32>
    %c0_10 = arith.constant 0 : index
    %c0_11 = arith.constant 0 : index
    %c0_12 = arith.constant 0 : index
    %33 = vector.load %arg5[%c0_10, %c0_11, %c0_12] : memref<1x32x256xf32, #tpu.memory_space<vmem>>, vector<1x32x256xf32>
    %34 = vector.shape_cast %33 : vector<1x32x256xf32> to vector<32x256xf32>
    %35 = vector.shape_cast %32 : vector<32x256xf32> to vector<1x32x256xf32>
    tpu.vector_store %arg5[%c0_10, %c0_11, %c0_12], %35 {strides = array<i32>} : memref<1x32x256xf32, #tpu.memory_space<vmem>>, vector<1x32x256xf32>,
    return
  }
  func.func @transform_0(%arg0: i32) -> (i32, i32, i32) {
    %c0_i32 = arith.constant 0 : i32
    %c0_i32_0 = arith.constant 0 : i32
    %c0_i32_1 = arith.constant 0 : i32
    return %arg0, %c0_i32, %c0_i32_0 : i32, i32, i32
  }
  func.func @transform_1(%arg0: i32) -> (i32, i32) {
    %c0_i32 = arith.constant 0 : i32
    %c0_i32_0 = arith.constant 0 : i32
    %c0_i32_1 = arith.constant 0 : i32
    return %c0_i32, %c0_i32_0 : i32, i32
  }
  func.func @transform_2(%arg0: i32) -> (i32, i32) {
    %c0_i32 = arith.constant 0 : i32
    %c0_i32_0 = arith.constant 0 : i32
    %c0_i32_1 = arith.constant 0 : i32
    return %c0_i32, %c0_i32_0 : i32, i32
  }
  func.func @transform_3(%arg0: i32) -> (i32, i32) {
    %c0_i32 = arith.constant 0 : i32
    %c0_i32_0 = arith.constant 0 : i32
    %c0_i32_1 = arith.constant 0 : i32
    return %c0_i32, %c0_i32_0 : i32, i32
  }
  func.func @transform_4(%arg0: i32) -> (i32, i32, i32) {
    %c0_i32 = arith.constant 0 : i32
    %c0_i32_0 = arith.constant 0 : i32
    %c0_i32_1 = arith.constant 0 : i32
    return %arg0, %c0_i32, %c0_i32_0 : i32, i32, i32
  }
}

</mosaic_0001>

<llo_original>
// kernel: tpu_custom_call.1
$region0: #{tpu_custom_call.1}
  #allocation0 [shape = 'u32[]', space=smem, size = 0x4, offset = 0x4, fixed_abs, tag = 'smem constant byte address 0x4 - core index']
  #allocation1 [shape = 'u32[144,128]{1,0:T(1,128)}', space=vmem, size = 0x12000, scoped, tag = 'internal scratch']
  %s0 = inlined_call_operand.hbm [shape: f32[2,16,256], index: 0, kind: input, shape index: {}]
  %s1 = inlined_call_operand.vmem [shape: f32[2,256], index: 1, kind: input, shape index: {}]
  %s2 = inlined_call_operand.hbm [shape: f32[32,144], index: 2, kind: input, shape index: {}]
  %s3 = inlined_call_operand.vmem [shape: f32[32,1], index: 3, kind: input, shape index: {}]
  %s4 = inlined_call_operand.hbm [shape: f32[2,32,256], index: 4, kind: output, shape index: {}]
  %s5 = sld [smem:[#allocation0]]
  $region57: #{tpu_custom_call.1} parent=0
    _
  %s7 = ssub.s32 1, %s5
  %s8 = scalar_select 0, %s7, %s5
  $region1: #{tpu_custom_call.1} parent=0
    #allocation2 [shape = 'u8[32768]{0}', space=vmem, size = 0x8000, scoped, tag = 'input window, operand 0']
    #allocation3 [shape = 's32[2]{0}', space=sflag, size = 0x8, scoped, tag = 'scoped memory for tpu_custom_call.1']
    #allocation4 [shape = 's32[2]{0}', space=sflag, size = 0x8, scoped, tag = 'scoped memory for tpu_custom_call.1']
    #allocation5 [shape = 'u8[32768]{0}', space=vmem, size = 0x8000, scoped, tag = 'input window, operand 2, single buffered']
    #allocation6 [shape = 's32[1]{0}', space=sflag, size = 0x4, scoped, tag = 'scoped memory for tpu_custom_call.1']
    #allocation7 [shape = 'u8[65536]{0}', space=vmem, size = 0x10000, scoped, tag = 'output window, operand 0']
    %9 = vsyncpa [#allocation3], 0
    %s10 = scalar_lea.sflag [#allocation3], 1
    %11 = vsyncpa %s10, 0
    %12 = vsyncpa [#allocation6], 0
    %13 = vsyncpa [#allocation4], 0
    %s14 = scalar_lea.sflag [#allocation4], 1
    %15 = vsyncpa %s14, 0
    loop: start=0, step=1, limit=4
    $region2: #{tpu_custom_call.1} parent=1 // loop_pre_header
      _
    $region3: #{tpu_custom_call.1} parent=1 // loop_header
      %s17 = sphi 0, %s21
      %p18 = scmp.ge.s32.totalorder %s17, 4
      %s27 = sphi 0, %s29
      %s30 = sphi 0, %s27
      %s31 = sphi 0, %s30
      %s47 = sphi 0, %s31
      %s51 = sphi 0, %s51
      %s53 = sphi 0, %s51
      %s54 = sphi 0, %s53
      %s68 = sphi 0, %s54
      %s72 = sphi 0, %s72
      %s74 = sphi 0, %s72
      %s75 = sphi 0, %s74
      %s89 = sphi 0, %s75
      %s93 = sphi 0, %s93
      %s95 = sphi 0, %s93
      %s96 = sphi 0, %s95
      %s110 = sphi 0, %s96
      %s116 = sphi 0, %s118
      %s119 = sphi 0, %s116
      %s120 = sphi 0, %s119
      %s136 = sphi 0, %s120
    $region4: #{tpu_custom_call.1} parent=1 // loop_header_branch
      %20 = sbr.rel (%p18) target = $region8
    $region5: #{tpu_custom_call.1} parent=1 // loop_body
      %s22 = ssub.s32 %s17, 1
      %s23 = ssub.s32 %s17, 2
      %s24 = sadd.s32 %s17, 1
      %s25 = ssub.s32 %s17, %s24
      %p26 = scmp.eq.s32.totalorder %s25, 0
      %s28 = sadd.s32 %s27, 1
      %s29 = scalar_select %p26, %s27, %s28
      %p32 = pneg %p26
      %p33 = scmp.eq.s32.totalorder %s17, 1
      %p34 = por %p32, %p33
      %p35 = scmp.ne.s32.totalorder %s27, %s30
      %p36 = scmp.eq.s32.totalorder %s17, 0
      %p37 = por %p35, %p36
      %p38 = scmp.ne.s32.totalorder %s27, %s30
      %p39 = scmp.eq.s32.totalorder %s22, 1
      %p40 = por %p38, %p39
      %p41 = scmp.ne.s32.totalorder %s30, %s31
      %p42 = scmp.eq.s32.totalorder %s22, 0
      %p43 = por %p41, %p42
      %p44 = scmp.ne.s32.totalorder %s30, %s31
      %p45 = scmp.eq.s32.totalorder %s23, 1
      %p46 = por %p44, %p45
      %p48 = scmp.ne.s32.totalorder %s31, %s47
      %p49 = scmp.eq.s32.totalorder %s23, 0
      %p50 = por %p48, %p49
      %s52 = sadd.s32 %s51, 1
      %p55 = scmp.eq.s32.totalorder %s17, 1
      %p56 = scmp.ne.s32.totalorder %s51, %s53
      %p57 = scmp.eq.s32.totalorder %s17, 0
      %p58 = por %p56, %p57
      %p59 = scmp.ne.s32.totalorder %s51, %s53
      %p60 = scmp.eq.s32.totalorder %s22, 1
      %p61 = por %p59, %p60
      %p62 = scmp.ne.s32.totalorder %s53, %s54
      %p63 = scmp.eq.s32.totalorder %s22, 0
      %p64 = por %p62, %p63
      %p65 = scmp.ne.s32.totalorder %s53, %s54
      %p66 = scmp.eq.s32.totalorder %s23, 1
      %p67 = por %p65, %p66
      %p69 = scmp.ne.s32.totalorder %s54, %s68
      %p70 = scmp.eq.s32.totalorder %s23, 0
      %p71 = por %p69, %p70
      %s73 = sadd.s32 %s72, 1
      %p76 = scmp.eq.s32.totalorder %s17, 1
      %p77 = scmp.ne.s32.totalorder %s72, %s74
      %p78 = scmp.eq.s32.totalorder %s17, 0
      %p79 = por %p77, %p78
      %p80 = scmp.ne.s32.totalorder %s72, %s74
      %p81 = scmp.eq.s32.totalorder %s22, 1
      %p82 = por %p80, %p81
      %p83 = scmp.ne.s32.totalorder %s74, %s75
      %p84 = scmp.eq.s32.totalorder %s22, 0
      %p85 = por %p83, %p84
      %p86 = scmp.ne.s32.totalorder %s74, %s75
      %p87 = scmp.eq.s32.totalorder %s23, 1
      %p88 = por %p86, %p87
      %p90 = scmp.ne.s32.totalorder %s75, %s89
      %p91 = scmp.eq.s32.totalorder %s23, 0
      %p92 = por %p90, %p91
      %s94 = sadd.s32 %s93, 1
      %p97 = scmp.eq.s32.totalorder %s17, 1
      %p98 = scmp.ne.s32.totalorder %s93, %s95
      %p99 = scmp.eq.s32.totalorder %s17, 0
      %p100 = por %p98, %p99
      %p101 = scmp.ne.s32.totalorder %s93, %s95
      %p102 = scmp.eq.s32.totalorder %s22, 1
      %p103 = por %p101, %p102
      %p104 = scmp.ne.s32.totalorder %s95, %s96
      %p105 = scmp.eq.s32.totalorder %s22, 0
      %p106 = por %p104, %p105
      %p107 = scmp.ne.s32.totalorder %s95, %s96
      %p108 = scmp.eq.s32.totalorder %s23, 1
      %p109 = por %p107, %p108
      %p111 = scmp.ne.s32.totalorder %s96, %s110
      %p112 = scmp.eq.s32.totalorder %s23, 0
      %p113 = por %p111, %p112
      %s114 = ssub.s32 %s17, %s24
      %p115 = scmp.eq.s32.totalorder %s114, 0
      %s117 = sadd.s32 %s116, 1
      %s118 = scalar_select %p115, %s116, %s117
      %p121 = pneg %p115
      %p122 = scmp.eq.s32.totalorder %s17, 1
      %p123 = por %p121, %p122
      %p124 = scmp.ne.s32.totalorder %s116, %s119
      %p125 = scmp.eq.s32.totalorder %s17, 0
      %p126 = por %p124, %p125
      %p127 = scmp.ne.s32.totalorder %s116, %s119
      %p128 = scmp.eq.s32.totalorder %s22, 1
      %p129 = por %p127, %p128
      %p130 = scmp.ne.s32.totalorder %s119, %s120
      %p131 = scmp.eq.s32.totalorder %s22, 0
      %p132 = por %p130, %p131
      %p133 = scmp.ne.s32.totalorder %s119, %s120
      %p134 = scmp.eq.s32.totalorder %s23, 1
      %p135 = por %p133, %p134
      %p137 = scmp.ne.s32.totalorder %s120, %s136
      %p138 = scmp.eq.s32.totalorder %s23, 0
      %p139 = por %p137, %p138
      %p140 = scmp.le.s32.totalorder 1, %s17
      %p141 = scmp.lt.s32.totalorder %s17, 3
      %p142 = pnand %p140, %p141
      %p143 = pneg %p142
      // Predicated region
      $region9: #{tpu_custom_call.1} parent=5 // pred_check
        _
      $region10: #{tpu_custom_call.1} parent=5 // pred_check_branch
        %145 = sbr.rel (%p142) target = $region12
      $region11: #{tpu_custom_call.1} parent=5 // pred_region
        %s146 = ssub.s32 %s17, 1
        // Predicated region
        $region13: #{tpu_custom_call.1} parent=11 // pred_check
          %p147 = pneg %p64
        $region14: #{tpu_custom_call.1} parent=11 // pred_check_branch
          %149 = sbr.rel (%p147) target = $region16
        $region15: #{tpu_custom_call.1} parent=11 // pred_region
          _
        $region16: #{tpu_custom_call.1} parent=11 // pred_fallthru
          _
        // Predicated region
        $region17: #{tpu_custom_call.1} parent=11 // pred_check
          %p150 = pneg %p85
        $region18: #{tpu_custom_call.1} parent=11 // pred_check_branch
          %152 = sbr.rel (%p150) target = $region20
        $region19: #{tpu_custom_call.1} parent=11 // pred_region
          %s154 = ssub.s32 1024, 1024
          %155 = vsyncadd [#allocation6], %s154
          %s156 = sshll.u32 [#allocation5], 4
          %s157 = int_to_ptr.vmem [resolvable:$true] %s156
          %162 = dma.hbm_to_vmem [thread:$0]  %s2, 1024, %s157, [#allocation6], 256, 256, 16
        $region20: #{tpu_custom_call.1} parent=11 // pred_fallthru
          _
        // Predicated region
        $region21: #{tpu_custom_call.1} parent=11 // pred_check
          %p163 = pneg %p106
        $region22: #{tpu_custom_call.1} parent=11 // pred_check_branch
          %165 = sbr.rel (%p163) target = $region24
        $region23: #{tpu_custom_call.1} parent=11 // pred_region
          _
        $region24: #{tpu_custom_call.1} parent=11 // pred_fallthru
          _
      $region12: #{tpu_custom_call.1} parent=5 // pred_fallthru
        _
      %p166 = scmp.lt.s32.totalorder %s17, 2
      // Predicated region
      $region25: #{tpu_custom_call.1} parent=5 // pred_check
        %p167 = pneg %p166
      $region26: #{tpu_custom_call.1} parent=5 // pred_check_branch
        %169 = sbr.rel (%p167) target = $region28
      $region27: #{tpu_custom_call.1} parent=5 // pred_region
        // Predicated region
        $region29: #{tpu_custom_call.1} parent=27 // pred_check
          %p170 = pneg %p37
        $region30: #{tpu_custom_call.1} parent=27 // pred_check_branch
          %172 = sbr.rel (%p170) target = $region32
        $region31: #{tpu_custom_call.1} parent=27 // pred_region
          %s173 = sand.u32 %s27, 1
          %s174 = scalar_lea.sflag [#allocation3], %s173
          %s175 = sand.u32 %s27, 1
          %s176 = smul.addr %s175, 32
          %s177 = scalar_lea.vmem [#allocation2], %s176
          %s179 = ssub.s32 512, 512
          %180 = vsyncadd %s174, %s179
          %s181 = smul.addr %s17, 4
          %s182 = smul.addr %s181, 128
          %s183 = scalar_lea.hbm %s0, %s182
          %s184 = sshll.u32 %s177, 4
          %s185 = int_to_ptr.vmem [resolvable:$true] %s184
          %190 = dma.hbm_to_vmem [thread:$0]  %s183, 512, %s185, %s174, 256, 256, 16
        $region32: #{tpu_custom_call.1} parent=27 // pred_fallthru
          _
      $region28: #{tpu_custom_call.1} parent=5 // pred_fallthru
        _
      %p191 = scmp.le.s32.totalorder 1, %s17
      %p192 = scmp.lt.s32.totalorder %s17, 3
      %p193 = pnand %p191, %p192
      %p194 = pneg %p193
      // Predicated region
      $region33: #{tpu_custom_call.1} parent=5 // pred_check
        _
      $region34: #{tpu_custom_call.1} parent=5 // pred_check_branch
        %196 = sbr.rel (%p193) target = $region36
      $region35: #{tpu_custom_call.1} parent=5 // pred_region
        %s197 = ssub.s32 %s17, 1
        %s198 = sand.u32 %s30, 1
        %s199 = scalar_lea.sflag [#allocation3], %s198
        %s200 = sand.u32 %s30, 1
        %s201 = smul.addr %s200, 32
        %s202 = scalar_lea.vmem [#allocation2], %s201
        // Predicated region
        $region37: #{tpu_custom_call.1} parent=35 // pred_check
          %p203 = pneg %p43
        $region38: #{tpu_custom_call.1} parent=35 // pred_check_branch
          %205 = sbr.rel (%p203) target = $region40
        $region39: #{tpu_custom_call.1} parent=35 // pred_region
          %206 = dma.done %s199, 512
        $region40: #{tpu_custom_call.1} parent=35 // pred_fallthru
          _
        // Predicated region
        $region41: #{tpu_custom_call.1} parent=35 // pred_check
          %p207 = pneg %p85
        $region42: #{tpu_custom_call.1} parent=35 // pred_check_branch
          %209 = sbr.rel (%p207) target = $region44
        $region43: #{tpu_custom_call.1} parent=35 // pred_region
          %210 = dma.done [#allocation6], 1024
        $region44: #{tpu_custom_call.1} parent=35 // pred_fallthru
          _
        %s211 = sand.u32 %s30, 1
        %s212 = scalar_lea.sflag [#allocation3], %s211
        %s213 = sand.u32 %s30, 1
        %s214 = smul.addr %s213, 32
        %s215 = scalar_lea.vmem [#allocation2], %s214
        %p216 = pneg %p43
        %p217 = pneg %p40
        %p218 = pneg %p64
        %p219 = pneg %p61
        %p220 = pneg %p85
        %p221 = pneg %p82
        %p222 = pneg %p106
        %p223 = pneg %p103
        %p224 = pneg %p132
        %p225 = pneg %p129
        %s226 = sand.u32 %s119, 1
        %s227 = scalar_lea.sflag [#allocation4], %s226
        %s228 = sand.u32 %s119, 1
        %s229 = smul.addr %s228, 64
        %s230 = scalar_lea.vmem [#allocation7], %s229
        %v231 = vld [vmem:[%s202] sm:$0xff]
        %v232 = vld [vmem:[%s202 + $0x8] sm:$0xff]
        %v233 = vld [vmem:[%s202 + $0x10] sm:$0xff]
        %v234 = vld [vmem:[%s202 + $0x18] sm:$0xff]
        %239 = vrot.lane.b32.xlu0 %v231, 17
        %v240 = vpop.permute.xlu0 %239
        %241 = vrot.lane.b32.xlu0 %v232, 17
        %v242 = vpop.permute.xlu0 %241
        %243 = vrot.lane.b32.xlu0 %v233, 17
        %v244 = vpop.permute.xlu0 %243
        %245 = vrot.lane.b32.xlu0 %v234, 17
        %v246 = vpop.permute.xlu0 %245
        %vm247 = vcmask 138240
        %v248 = vsel %vm247, %v240, %v242
        %v249 = vsel %vm247, %v244, %v246
        %v256 = vsel %vm247, 0.0, %v240
        %v257 = vsel %vm247, 0.0, %v244
        %v258 = vsel %vm247, %v242, 0.0
        %v259 = vsel %vm247, %v246, 0.0
        %v260 = vld [vmem:[%s1] ss:$2 sm:$0x3]
        %s261 = scalar_lea.vmem %s1, 1
        %v262 = vld [vmem:[%s261] ss:$2 sm:$0x3]
        %v264 = vlaneseq
        %v265 = vshrl.u32 %v264, 7
        %v266 = vsub.s32 0, %v265
        %v267 = vrot.slane %v260, %v266
        %v268 = vlaneseq
        %v269 = vshrl.u32 %v268, 7
        %v270 = vsub.s32 1, %v269
        %v271 = vrot.slane %v260, %v270
        %v274 = vmul.f32 %v256, %v267
        %v275 = vmul.f32 %v248, %v271
        %v276 = vmul.f32 %v257, %v267
        %v277 = vmul.f32 %v249, %v271
        %v279 = vlaneseq
        %v280 = vshrl.u32 %v279, 7
        %v281 = vsub.s32 0, %v280
        %v282 = vrot.slane %v262, %v281
        %v283 = vlaneseq
        %v284 = vshrl.u32 %v283, 7
        %v285 = vsub.s32 1, %v284
        %v286 = vrot.slane %v262, %v285
        %287 = vrot.lane.b32.xlu0 %v282, 2
        %v288 = vpop.permute.xlu0 %287
        %289 = vrot.lane.b32.xlu0 %v286, 2
        %v290 = vpop.permute.xlu0 %289
        %vm291 = vcmask 15360
        %v292 = vsel %vm291, %v288, %v290
        %v296 = vmul.f32 %v256, %v288
        %v297 = vmul.f32 %v248, %v292
        %v298 = vmul.f32 %v258, %v290
        %v299 = vmul.f32 %v257, %v288
        %v300 = vmul.f32 %v249, %v292
        %v301 = vmul.f32 %v259, %v290
        %302 = vrot.lane.b32.xlu0 %v267, 16
        %v303 = vpop.permute.xlu0 %302
        %304 = vrot.lane.b32.xlu0 %v271, 16
        %v305 = vpop.permute.xlu0 %304
        %vm306 = vcmask 130048
        %v307 = vsel %vm306, %v303, %v305
        %v311 = vmul.f32 %v256, %v303
        %v312 = vmul.f32 %v248, %v307
        %v313 = vmul.f32 %v258, %v305
        %v314 = vmul.f32 %v257, %v303
        %v315 = vmul.f32 %v249, %v307
        %v316 = vmul.f32 %v259, %v305
        %317 = vrot.lane.b32.xlu0 %v282, 18
        %v318 = vpop.permute.xlu0 %317
        %319 = vrot.lane.b32.xlu0 %v286, 18
        %v320 = vpop.permute.xlu0 %319
        %vm321 = vcmask 146432
        %v322 = vsel %vm321, %v318, %v320
        %v326 = vmul.f32 %v256, %v318
        %v327 = vmul.f32 %v248, %v322
        %v328 = vmul.f32 %v258, %v320
        %v329 = vmul.f32 %v257, %v318
        %v330 = vmul.f32 %v249, %v322
        %v331 = vmul.f32 %v259, %v320
        %332 = vrot.lane.b32.xlu0 %v267, 32
        %v333 = vpop.permute.xlu0 %332
        %334 = vrot.lane.b32.xlu0 %v271, 32
        %v335 = vpop.permute.xlu0 %334
        %vm336 = vcmask 261120
        %v337 = vsel %vm336, %v333, %v335
        %v341 = vmul.f32 %v256, %v333
        %v342 = vmul.f32 %v248, %v337
        %v343 = vmul.f32 %v258, %v335
        %v344 = vmul.f32 %v257, %v333
        %v345 = vmul.f32 %v249, %v337
        %v346 = vmul.f32 %v259, %v335
        %347 = vrot.lane.b32.xlu0 %v282, 34
        %v348 = vpop.permute.xlu0 %347
        %349 = vrot.lane.b32.xlu0 %v286, 34
        %v350 = vpop.permute.xlu0 %349
        %vm351 = vcmask 277504
        %v352 = vsel %vm351, %v348, %v350
        %v356 = vmul.f32 %v256, %v348
        %v357 = vmul.f32 %v248, %v352
        %v358 = vmul.f32 %v258, %v350
        %v359 = vmul.f32 %v257, %v348
        %v360 = vmul.f32 %v249, %v352
        %v361 = vmul.f32 %v259, %v350
        %366 = vrot.lane.b32.xlu0 %v256, 127
        %v367 = vpop.permute.xlu0 %366
        %368 = vrot.lane.b32.xlu0 %v248, 127
        %v369 = vpop.permute.xlu0 %368
        %370 = vrot.lane.b32.xlu0 %v258, 127
        %v371 = vpop.permute.xlu0 %370
        %372 = vrot.lane.b32.xlu0 %v257, 127
        %v373 = vpop.permute.xlu0 %372
        %374 = vrot.lane.b32.xlu0 %v249, 127
        %v375 = vpop.permute.xlu0 %374
        %376 = vrot.lane.b32.xlu0 %v259, 127
        %v377 = vpop.permute.xlu0 %376
        %vm378 = vcmask 1039360
        %v379 = vsel %vm378, %v367, %v369
        %v380 = vsel %vm378, %v369, %v371
        %v381 = vsel %vm378, %v373, %v375
        %v382 = vsel %vm378, %v375, %v377
        %393 = vrot.lane.b32.xlu0 %v296, 126
        %v394 = vpop.permute.xlu0 %393
        %395 = vrot.lane.b32.xlu0 %v297, 126
        %v396 = vpop.permute.xlu0 %395
        %397 = vrot.lane.b32.xlu0 %v298, 126
        %v398 = vpop.permute.xlu0 %397
        %399 = vrot.lane.b32.xlu0 %v299, 126
        %v400 = vpop.permute.xlu0 %399
        %401 = vrot.lane.b32.xlu0 %v300, 126
        %v402 = vpop.permute.xlu0 %401
        %403 = vrot.lane.b32.xlu0 %v301, 126
        %v404 = vpop.permute.xlu0 %403
        %vm405 = vcmask 1031168
        %v406 = vsel %vm405, %v394, %v396
        %v407 = vsel %vm405, %v396, %v398
        %v408 = vsel %vm405, %v400, %v402
        %v409 = vsel %vm405, %v402, %v404
        %420 = vrot.lane.b32.xlu0 %v311, 112
        %v421 = vpop.permute.xlu0 %420
        %422 = vrot.lane.b32.xlu0 %v312, 112
        %v423 = vpop.permute.xlu0 %422
        %424 = vrot.lane.b32.xlu0 %v313, 112
        %v425 = vpop.permute.xlu0 %424
        %426 = vrot.lane.b32.xlu0 %v314, 112
        %v427 = vpop.permute.xlu0 %426
        %428 = vrot.lane.b32.xlu0 %v315, 112
        %v429 = vpop.permute.xlu0 %428
        %430 = vrot.lane.b32.xlu0 %v316, 112
        %v431 = vpop.permute.xlu0 %430
        %vm432 = vcmask 916480
        %v433 = vsel %vm432, %v421, %v423
        %v434 = vsel %vm432, %v423, %v425
        %v435 = vsel %vm432, %v427, %v429
        %v436 = vsel %vm432, %v429, %v431
        %441 = vrot.lane.b32.xlu0 %v256, 111
        %v442 = vpop.permute.xlu0 %441
        %443 = vrot.lane.b32.xlu0 %v248, 111
        %v444 = vpop.permute.xlu0 %443
        %445 = vrot.lane.b32.xlu0 %v258, 111
        %v446 = vpop.permute.xlu0 %445
        %447 = vrot.lane.b32.xlu0 %v257, 111
        %v448 = vpop.permute.xlu0 %447
        %449 = vrot.lane.b32.xlu0 %v249, 111
        %v450 = vpop.permute.xlu0 %449
        %451 = vrot.lane.b32.xlu0 %v259, 111
        %v452 = vpop.permute.xlu0 %451
        %vm453 = vcmask 908288
        %v454 = vsel %vm453, %v442, %v444
        %v455 = vsel %vm453, %v444, %v446
        %v456 = vsel %vm453, %v448, %v450
        %v457 = vsel %vm453, %v450, %v452
        %468 = vrot.lane.b32.xlu0 %v326, 110
        %v469 = vpop.permute.xlu0 %468
        %470 = vrot.lane.b32.xlu0 %v327, 110
        %v471 = vpop.permute.xlu0 %470
        %472 = vrot.lane.b32.xlu0 %v328, 110
        %v473 = vpop.permute.xlu0 %472
        %474 = vrot.lane.b32.xlu0 %v329, 110
        %v475 = vpop.permute.xlu0 %474
        %476 = vrot.lane.b32.xlu0 %v330, 110
        %v477 = vpop.permute.xlu0 %476
        %478 = vrot.lane.b32.xlu0 %v331, 110
        %v479 = vpop.permute.xlu0 %478
        %vm480 = vcmask 900096
        %v481 = vsel %vm480, %v469, %v471
        %v482 = vsel %vm480, %v471, %v473
        %v483 = vsel %vm480, %v475, %v477
        %v484 = vsel %vm480, %v477, %v479
        %495 = vrot.lane.b32.xlu0 %v341, 96
        %v496 = vpop.permute.xlu0 %495
        %497 = vrot.lane.b32.xlu0 %v342, 96
        %v498 = vpop.permute.xlu0 %497
        %499 = vrot.lane.b32.xlu0 %v343, 96
        %v500 = vpop.permute.xlu0 %499
        %501 = vrot.lane.b32.xlu0 %v344, 96
        %v502 = vpop.permute.xlu0 %501
        %503 = vrot.lane.b32.xlu0 %v345, 96
        %v504 = vpop.permute.xlu0 %503
        %505 = vrot.lane.b32.xlu0 %v346, 96
        %v506 = vpop.permute.xlu0 %505
        %vm507 = vcmask 785408
        %v508 = vsel %vm507, %v496, %v498
        %v509 = vsel %vm507, %v498, %v500
        %v510 = vsel %vm507, %v502, %v504
        %v511 = vsel %vm507, %v504, %v506
        %516 = vrot.lane.b32.xlu0 %v256, 95
        %v517 = vpop.permute.xlu0 %516
        %518 = vrot.lane.b32.xlu0 %v248, 95
        %v519 = vpop.permute.xlu0 %518
        %520 = vrot.lane.b32.xlu0 %v258, 95
        %v521 = vpop.permute.xlu0 %520
        %522 = vrot.lane.b32.xlu0 %v257, 95
        %v523 = vpop.permute.xlu0 %522
        %524 = vrot.lane.b32.xlu0 %v249, 95
        %v525 = vpop.permute.xlu0 %524
        %526 = vrot.lane.b32.xlu0 %v259, 95
        %v527 = vpop.permute.xlu0 %526
        %vm528 = vcmask 777216
        %v529 = vsel %vm528, %v517, %v519
        %v530 = vsel %vm528, %v519, %v521
        %v531 = vsel %vm528, %v523, %v525
        %v532 = vsel %vm528, %v525, %v527
        %543 = vrot.lane.b32.xlu0 %v356, 94
        %v544 = vpop.permute.xlu0 %543
        %545 = vrot.lane.b32.xlu0 %v357, 94
        %v546 = vpop.permute.xlu0 %545
        %547 = vrot.lane.b32.xlu0 %v358, 94
        %v548 = vpop.permute.xlu0 %547
        %549 = vrot.lane.b32.xlu0 %v359, 94
        %v550 = vpop.permute.xlu0 %549
        %551 = vrot.lane.b32.xlu0 %v360, 94
        %v552 = vpop.permute.xlu0 %551
        %553 = vrot.lane.b32.xlu0 %v361, 94
        %v554 = vpop.permute.xlu0 %553
        %vm555 = vcmask 769024
        %v556 = vsel %vm555, %v544, %v546
        %v557 = vsel %vm555, %v546, %v548
        %v558 = vsel %vm555, %v550, %v552
        %v559 = vsel %vm555, %v552, %v554
        %v564 = vld [vmem:[#allocation5] sm:$0xff]
        %v565 = vld [vmem:[#allocation5 + $0x8] sm:$0xff]
        %v566 = vld [vmem:[#allocation5 + $0x10] sm:$0xff]
        %v567 = vld [vmem:[#allocation5 + $0x18] sm:$0xff]
        %v568 = vld [vmem:[#allocation5 + $0x20] sm:$0xff]
        %v569 = vld [vmem:[#allocation5 + $0x28] sm:$0xff]
        %v570 = vld [vmem:[#allocation5 + $0x30] sm:$0xff]
        %v571 = vld [vmem:[#allocation5 + $0x38] sm:$0xff]
        %v572 = vld [vmem:[%s3] sm:$0xff]
        %v573 = vld [vmem:[%s3 + $0x8] sm:$0xff]
        %v574 = vld [vmem:[%s3 + $0x10] sm:$0xff]
        %v575 = vld [vmem:[%s3 + $0x18] sm:$0xff]
        %577 = vset.pattern.permute.xlu0 0
        %578 = vperm.xlu0 %577, %v572
        %v579 = vpop.permute.xlu0 %578
        %582 = vset.pattern.permute.xlu0 0
        %583 = vperm.xlu0 %582, %v573
        %v584 = vpop.permute.xlu0 %583
        %587 = vset.pattern.permute.xlu0 0
        %588 = vperm.xlu0 %587, %v574
        %v589 = vpop.permute.xlu0 %588
        %592 = vset.pattern.permute.xlu0 0
        %593 = vperm.xlu0 %592, %v575
        %v594 = vpop.permute.xlu0 %593
        %v597 = vsel %vm306, %v565, 0
        %v600 = vsel %vm306, %v567, 0
        %v603 = vsel %vm306, %v569, 0
        %v606 = vsel %vm306, %v571, 0
        %608 = vmatprep.subr.mxu0 %v275
        %609 = vmatpush1.msra.mxu0 %v274
        %610 = vmatprep.subr.mxu0 %v277
        %611 = vmatpush1.msra.mxu0 %v276
        %612 = vmatprep.subr.mxu0 %v380
        %613 = vmatpush1.msra.mxu0 %v379
        %614 = vmatprep.subr.mxu0 %v382
        %615 = vmatpush1.msra.mxu0 %v381
        %616 = vmatprep.subr.mxu0 %v407
        %617 = vmatpush1.msra.mxu0 %v406
        %618 = vmatprep.subr.mxu0 %v409
        %619 = vmatpush1.msra.mxu0 %v408
        %620 = vmatprep.subr.mxu0 %v434
        %621 = vmatpush1.msra.mxu0 %v433
        %622 = vmatprep.subr.mxu0 %v436
        %623 = vmatpush1.msra.mxu0 %v435
        %624 = vmatprep.subr.mxu0 %v455
        %625 = vmatpush1.msra.mxu0 %v454
        %626 = vmatprep.subr.mxu0 %v457
        %627 = vmatpush1.msra.mxu0 %v456
        %628 = vmatprep.subr.mxu0 %v482
        %629 = vmatpush1.msra.mxu0 %v481
        %630 = vmatprep.subr.mxu0 %v484
        %631 = vmatpush1.msra.mxu0 %v483
        %632 = vmatprep.subr.mxu0 %v509
        %633 = vmatpush1.msra.mxu0 %v508
        %634 = vmatprep.subr.mxu0 %v511
        %635 = vmatpush1.msra.mxu0 %v510
        %636 = vmatprep.subr.mxu0 %v530
        %637 = vmatpush1.msra.mxu0 %v529
        %638 = vmatprep.subr.mxu0 %v532
        %639 = vmatpush1.msra.mxu0 %v531
        %640 = vmatprep.subr.mxu0 %v557
        %641 = vmatpush1.msra.mxu0 %v556
        %642 = vmatprep.subr.mxu0 %v559
        %643 = vmatpush1.msra.mxu0 %v558
        %644 = vmatprep.subr.mxu0 0.0
        %645 = vmatpush1.msra.mxu0 0.0
        %646 = vmatprep.subr.mxu0 0.0
        %647 = vmatpush1.msra.mxu0 0.0
        %648 = vmatprep.subr.mxu0 0.0
        %649 = vmatpush1.msra.mxu0 0.0
        %650 = vmatprep.subr.mxu0 0.0
        %651 = vmatpush1.msra.mxu0 0.0
        %652 = vmatprep.subr.mxu0 0.0
        %653 = vmatpush1.msra.mxu0 0.0
        %654 = vmatprep.subr.mxu0 0.0
        %655 = vmatpush1.msra.mxu0 0.0
        %656 = vmatprep.subr.mxu0 0.0
        %657 = vmatpush1.msra.mxu0 0.0
        %658 = vmatprep.subr.mxu0 0.0
        %659 = vmatpush1.msra.mxu0 0.0
        %660 = vmatprep.subr.mxu0 0.0
        %661 = vmatpush1.msra.mxu0 0.0
        %662 = vmatprep.subr.mxu0 0.0
        %663 = vmatpush1.msra.mxu0 0.0
        %664 = vmatprep.subr.mxu0 0.0
        %665 = vmatpush1.msra.mxu0 0.0
        %666 = vmatprep.subr.mxu0 0.0
        %667 = vmatpush1.msra.mxu0 0.0
        %668 = vmatprep.subr.mxu0 0.0
        %669 = vmatpush1.msra.mxu0 0.0
        %670 = vmatprep.subr.mxu0 0.0
        %671 = vmatpush1.msra.mxu0 0.0
        %672 = vmatprep.mubr.f32.mxu0 %v597
        %673 = vmatmul.mubr.f32.gmra.mrb[0].mxu0 %v564
        %v674 = vpop.f32.mrb[0].mxu0
        %v675 = vadd.f32 %v579, %v674
        %v676 = vpop.f32.mrb[0].mxu0
        %v677 = vadd.f32 %v579, %v676
        %678 = vmatprep.mubr.f32.mxu0 %v600
        %679 = vmatmul.mubr.f32.gmra.mrb[0].mxu0 %v566
        %v680 = vpop.f32.mrb[0].mxu0
        %v681 = vadd.f32 %v584, %v680
        %v682 = vpop.f32.mrb[0].mxu0
        %v683 = vadd.f32 %v584, %v682
        %684 = vmatprep.mubr.f32.mxu0 %v603
        %685 = vmatmul.mubr.f32.gmra.mrb[0].mxu0 %v568
        %v686 = vpop.f32.mrb[0].mxu0
        %v687 = vadd.f32 %v589, %v686
        %v688 = vpop.f32.mrb[0].mxu0
        %v689 = vadd.f32 %v589, %v688
        %690 = vmatprep.mubr.f32.mxu0 %v606
        %691 = vmatmul.mubr.f32.gmra.mrb[0].mxu0 %v570
        %v692 = vpop.f32.mrb[0].mxu0
        %v693 = vadd.f32 %v594, %v692
        %v694 = vpop.f32.mrb[0].mxu0
        %v695 = vadd.f32 %v594, %v694
        %696 = vdwg.mxu0
        %697 = vst [vmem:[%s230] sm:$0xff] %v675
        %698 = vst [vmem:[%s230 + $0x8] sm:$0xff] %v677
        %699 = vst [vmem:[%s230 + $0x10] sm:$0xff] %v681
        %700 = vst [vmem:[%s230 + $0x18] sm:$0xff] %v683
        %701 = vst [vmem:[%s230 + $0x20] sm:$0xff] %v687
        %702 = vst [vmem:[%s230 + $0x28] sm:$0xff] %v689
        %703 = vst [vmem:[%s230 + $0x30] sm:$0xff] %v693
        %704 = vst [vmem:[%s230 + $0x38] sm:$0xff] %v695
        %s705 = sand.u32 %s119, 1
        %s706 = scalar_lea.sflag [#allocation4], %s705
        %s707 = sand.u32 %s119, 1
        %s708 = smul.addr %s707, 64
        %s709 = scalar_lea.vmem [#allocation7], %s708
        // Predicated region
        $region45: #{tpu_custom_call.1} parent=35 // pred_check
          %p710 = pneg %p129
        $region46: #{tpu_custom_call.1} parent=35 // pred_check_branch
          %712 = sbr.rel (%p710) target = $region48
        $region47: #{tpu_custom_call.1} parent=35 // pred_region
          %s714 = ssub.s32 1024, 1024
          %715 = vsyncadd %s706, %s714
          %s716 = smul.addr %s22, 8
          %s717 = smul.addr %s716, 128
          %s718 = scalar_lea.hbm %s4, %s717
          %s719 = sshll.u32 %s709, 4
          %s720 = int_to_ptr.vmem [resolvable:$true] %s719
          %725 = dma.vmem_to_hbm [thread:$0]  %s720, 1024, %s718, %s706, 256, 256, 16
        $region48: #{tpu_custom_call.1} parent=35 // pred_fallthru
          _
      $region36: #{tpu_custom_call.1} parent=5 // pred_fallthru
        _
      %p726 = scmp.le.s32.totalorder 2, %s17
      // Predicated region
      $region49: #{tpu_custom_call.1} parent=5 // pred_check
        %p727 = pneg %p726
      $region50: #{tpu_custom_call.1} parent=5 // pred_check_branch
        %729 = sbr.rel (%p727) target = $region52
      $region51: #{tpu_custom_call.1} parent=5 // pred_region
        %s730 = ssub.s32 %s17, 2
        // Predicated region
        $region53: #{tpu_custom_call.1} parent=51 // pred_check
          %p731 = pneg %p135
        $region54: #{tpu_custom_call.1} parent=51 // pred_check_branch
          %733 = sbr.rel (%p731) target = $region56
        $region55: #{tpu_custom_call.1} parent=51 // pred_region
          %s734 = sand.u32 %s120, 1
          %s735 = scalar_lea.sflag [#allocation4], %s734
          %s736 = sand.u32 %s120, 1
          %s737 = smul.addr %s736, 64
          %s738 = scalar_lea.vmem [#allocation7], %s737
          %739 = dma.done %s735, 1024
        $region56: #{tpu_custom_call.1} parent=51 // pred_fallthru
          _
      $region52: #{tpu_custom_call.1} parent=5 // pred_fallthru
        _
    $region6: #{tpu_custom_call.1} parent=1 // loop_footer
      %s21 = sadd.s32 1, %s17
    $region7: #{tpu_custom_call.1} parent=1 // loop_footer_branch
      %16 = sbr.rel target = $region3
    $region8: #{tpu_custom_call.1} parent=1 // loop_exit
      _
    %740 = vsyncpa [#allocation3], 1
    %s741 = scalar_lea.sflag [#allocation3], 1
    %742 = vsyncpa %s741, 1
    %743 = vsyncpa [#allocation6], 1
    %744 = vsyncpa [#allocation4], 1
    %s745 = scalar_lea.sflag [#allocation4], 1
    %746 = vsyncpa %s745, 1

</llo_original>
